<compile_context>
chip_gen: v7x
topology: tpu7x:2x2x1
jax: 0.10.0
libtpu: 0.0.40
codegen_flags: <defaults>
</compile_context>

<pallas_src>
import functools

import jax
import jax.numpy as jnp
from jax import lax
from jax.experimental import pallas as pl
from jax.experimental.pallas import tpu as pltpu


def _adailn_kernel(x_ref, gamma_ref, beta_ref, rho_ref, o_ref, *, eps):
    # x_ref: (Bt, C, HW); gamma/beta: (Bt, C, 1); rho: (1, C, 1)
    x = x_ref[...].astype(jnp.float32)
    _, C, HW = x.shape

    # ---- Instance-Norm partials: per (batch, channel), reduce over spatial ----
    in_mean = jnp.mean(x, axis=-1, keepdims=True)                  # (Bt, C, 1)
    dx = x - in_mean                                               # full-tile pass 1
    in_ssq = jnp.sum(dx * dx, axis=-1, keepdims=True)              # (Bt, C, 1)
    in_var = in_ssq / (HW - 1)                                     # unbiased (torch.var default)
    inv_in = lax.rsqrt(in_var + eps)                               # EUP, per-channel

    # ---- Layer-Norm stats derived from IN partials (law of total variance) ----
    # Exact because every channel contributes the same HW elements.
    ln_mean = jnp.mean(in_mean, axis=1, keepdims=True)             # (Bt, 1, 1)
    dmean = in_mean - ln_mean
    ln_ssq = (jnp.sum(in_ssq, axis=1, keepdims=True)
              + HW * jnp.sum(dmean * dmean, axis=1, keepdims=True))
    ln_var = ln_ssq / (C * HW - 1)                                 # unbiased
    inv_ln = lax.rsqrt(ln_var + eps)                               # (Bt, 1, 1)

    # ---- fold normalize + rho-blend + affine into per-channel s, t ----
    rho = rho_ref[...].astype(jnp.float32)                         # (1, C, 1)
    gamma = gamma_ref[...].astype(jnp.float32)                     # (Bt, C, 1)
    beta = beta_ref[...].astype(jnp.float32)                       # (Bt, C, 1)

    blend_scale = rho * inv_in + (1.0 - rho) * inv_ln              # (Bt, C, 1)
    blend_shift = rho * in_mean * inv_in + (1.0 - rho) * ln_mean * inv_ln
    s = gamma * blend_scale                                        # (Bt, C, 1)
    t = beta - gamma * blend_shift                                 # (Bt, C, 1)

    # Single full-tile multiply-add (pass 2), then store.
    o_ref[...] = (x * s + t).astype(o_ref.dtype)


def _largest_divisor_at_most(n, cap):
    cap = max(1, min(n, cap))
    for d in range(cap, 0, -1):
        if n % d == 0:
            return d
    return 1


def adailn_forward(x, gamma, beta, rho, eps=1e-5,
                   block_bytes_target=4 * 1024 * 1024):
    """x: (B, C, H, W) NCHW; gamma/beta: (B, C); rho: broadcastable to (1, C, 1, 1)."""
    B, C, H, W = x.shape
    HW = H * W
    assert HW > 1 and C * HW > 1, "unbiased variance requires more than one element"

    x_flat = x.reshape(B, C, HW)
    gamma_r = gamma.reshape(B, C, 1)
    beta_r = beta.reshape(B, C, 1)
    rho_r = jnp.asarray(rho).reshape(1, C, 1)

    # Batch several elements per grid step so the x block is a few MiB.
    per_batch_bytes = C * HW * x.dtype.itemsize
    bt_cap = max(1, block_bytes_target // max(per_batch_bytes, 1))
    Bt = _largest_divisor_at_most(B, bt_cap)
    block_bytes = Bt * per_batch_bytes

    # Double-buffered input + output (+ small params).  Raise v5e's 16 MiB default
    # scope but stay under v7x's 64 MiB physical VMEM.
    vmem_limit = int(min(60 * 1024 * 1024,
                         max(32 * 1024 * 1024, 4 * block_bytes + (2 << 20))))
    # TODO(synk): for very large C*HW (single-element slab > ~8 MiB), switch to a
    # chunked stats-then-apply two-pass structure over a spatial grid axis.

    kernel = functools.partial(_adailn_kernel, eps=eps)

    out_flat = pl.pallas_call(
        kernel,
        out_shape=jax.ShapeDtypeStruct((B, C, HW), x.dtype),
        grid_spec=pltpu.PrefetchScalarGridSpec(
            num_scalar_prefetch=0,
            grid=(B // Bt,),
            in_specs=[
                pl.BlockSpec((Bt, C, HW), lambda b: (b, 0, 0)),   # x
                pl.BlockSpec((Bt, C, 1), lambda b: (b, 0, 0)),    # gamma
                pl.BlockSpec((Bt, C, 1), lambda b: (b, 0, 0)),    # beta
                pl.BlockSpec((1, C, 1), lambda b: (0, 0, 0)),     # rho (shared)
            ],
            out_specs=pl.BlockSpec((Bt, C, HW), lambda b: (b, 0, 0)),
        ),
        compiler_params=pltpu.CompilerParams(
            dimension_semantics=("parallel",),
            vmem_limit_bytes=vmem_limit,
        ),
    )(x_flat, gamma_r, beta_r, rho_r)

    return out_flat.reshape(B, C, H, W)


def adailn_reference(x, gamma, beta, rho, eps=1e-5):
    """Pure-JAX reference mirroring the PyTorch forward (unbiased variance)."""
    x = x.astype(jnp.float32)
    in_mean = jnp.mean(x, axis=(2, 3), keepdims=True)
    in_var = jnp.var(x, axis=(2, 3), keepdims=True, ddof=1)
    out_in = (x - in_mean) / jnp.sqrt(in_var + eps)
    ln_mean = jnp.mean(x, axis=(1, 2, 3), keepdims=True)
    ln_var = jnp.var(x, axis=(1, 2, 3), keepdims=True, ddof=1)
    out_ln = (x - ln_mean) / jnp.sqrt(ln_var + eps)
    out = rho * out_in + (1 - rho) * out_ln
    return out * gamma[:, :, None, None] + beta[:, :, None, None]


if __name__ == "__main__":
    B, C, H, W = 2, 4, 16, 16

    key = jax.random.PRNGKey(0)
    kx, kg, kb = jax.random.split(key, 3)
    x = jax.random.normal(kx, (B, C, H, W), dtype=jnp.float32)
    gamma = jax.random.normal(kg, (B, C), dtype=jnp.float32)
    beta = jax.random.normal(kb, (B, C), dtype=jnp.float32)

    # Parameter init as in adaILN.__init__: rho filled with 0.9, shape (1, C, 1, 1)
    rho = jnp.full((1, C, 1, 1), 0.9, dtype=jnp.float32)

    out = adailn_forward(x, gamma, beta, rho)
    out = jax.block_until_ready(out)

    ref = adailn_reference(x, gamma, beta, rho)
    assert out.shape == (B, C, H, W)
    assert jnp.allclose(out, ref, atol=1e-4, rtol=1e-4), "mismatch vs reference"

    print("KERNEL_OK")
</pallas_src>

<mosaic_0001>
module attributes {stable_mosaic.version = 11 : i64} {
  func.func @_adailn_kernel(%arg0: i32, %arg1: memref<2x4x256xf32, #tpu.memory_space<vmem>>, %arg2: memref<2x4x1xf32, #tpu.memory_space<vmem>>, %arg3: memref<2x4x1xf32, #tpu.memory_space<vmem>>, %arg4: memref<1x4x1xf32, #tpu.memory_space<vmem>>, %arg5: memref<2x4x256xf32, #tpu.memory_space<vmem>>) attributes {dimension_semantics = [#tpu.dimension_semantics<parallel>], iteration_bounds = array<i64: 1>, scalar_prefetch = 0 : i64, scratch_operands = 0 : i64, tpu.core_type = #tpu.core_type<tc>, window_params = [{transform_indices = @transform_0, window_bounds = array<i64: 2, 4, 256>}, {transform_indices = @transform_1, window_bounds = array<i64: 2, 4, 1>}, {transform_indices = @transform_2, window_bounds = array<i64: 2, 4, 1>}, {pipeline_mode = #tpu.pipeline_mode<synchronous>, transform_indices = @transform_3, window_bounds = array<i64: 1, 4, 1>}, {transform_indices = @transform_4, window_bounds = array<i64: 2, 4, 256>}]} {
    %c0 = arith.constant 0 : index
    %c0_0 = arith.constant 0 : index
    %c0_1 = arith.constant 0 : index
    %0 = vector.load %arg1[%c0, %c0_0, %c0_1] : memref<2x4x256xf32, #tpu.memory_space<vmem>>, vector<2x4x256xf32>
    %cst = arith.constant dense<0.000000e+00> : vector<2x4xf32>
    %1 = vector.multi_reduction <add>, %0, %cst [2] : vector<2x4x256xf32> to vector<2x4xf32>
    %2 = vector.shape_cast %1 : vector<2x4xf32> to vector<2x4x1xf32>
    %cst_2 = arith.constant 2.560000e+02 : f32
    %3 = vector.broadcast %cst_2 : f32 to vector<2x4x1xf32>
    %4 = arith.divf %2, %3 : vector<2x4x1xf32>
    %5 = vector.broadcast %4 : vector<2x4x1xf32> to vector<2x4x256xf32>
    %6 = arith.subf %0, %5 : vector<2x4x256xf32>
    %7 = arith.mulf %6, %6 : vector<2x4x256xf32>
    %cst_3 = arith.constant dense<0.000000e+00> : vector<2x4xf32>
    %8 = vector.multi_reduction <add>, %7, %cst_3 [2] : vector<2x4x256xf32> to vector<2x4xf32>
    %9 = vector.shape_cast %8 : vector<2x4xf32> to vector<2x4x1xf32>
    %cst_4 = arith.constant 2.550000e+02 : f32
    %10 = vector.broadcast %cst_4 : f32 to vector<2x4x1xf32>
    %11 = arith.divf %9, %10 : vector<2x4x1xf32>
    %cst_5 = arith.constant 9.99999974E-6 : f32
    %12 = vector.broadcast %cst_5 : f32 to vector<2x4x1xf32>
    %13 = arith.addf %11, %12 : vector<2x4x1xf32>
    %14 = math.rsqrt %13 : vector<2x4x1xf32>
    %cst_6 = arith.constant dense<0.000000e+00> : vector<2x1xf32>
    %15 = vector.multi_reduction <add>, %4, %cst_6 [1] : vector<2x4x1xf32> to vector<2x1xf32>
    %16 = vector.shape_cast %15 : vector<2x1xf32> to vector<2x1x1xf32>
    %cst_7 = arith.constant 4.000000e+00 : f32
    %17 = vector.broadcast %cst_7 : f32 to vector<2x1x1xf32>
    %18 = arith.divf %16, %17 : vector<2x1x1xf32>
    %19 = vector.broadcast %18 : vector<2x1x1xf32> to vector<2x4x1xf32>
    %20 = arith.subf %4, %19 : vector<2x4x1xf32>
    %cst_8 = arith.constant dense<0.000000e+00> : vector<2x1xf32>
    %21 = vector.multi_reduction <add>, %9, %cst_8 [1] : vector<2x4x1xf32> to vector<2x1xf32>
    %22 = vector.shape_cast %21 : vector<2x1xf32> to vector<2x1x1xf32>
    %23 = arith.mulf %20, %20 : vector<2x4x1xf32>
    %cst_9 = arith.constant dense<0.000000e+00> : vector<2x1xf32>
    %24 = vector.multi_reduction <add>, %23, %cst_9 [1] : vector<2x4x1xf32> to vector<2x1xf32>
    %25 = vector.shape_cast %24 : vector<2x1xf32> to vector<2x1x1xf32>
    %cst_10 = arith.constant 2.560000e+02 : f32
    %26 = vector.broadcast %cst_10 : f32 to vector<2x1x1xf32>
    %27 = arith.mulf %26, %25 : vector<2x1x1xf32>
    %28 = arith.addf %22, %27 : vector<2x1x1xf32>
    %cst_11 = arith.constant 1.023000e+03 : f32
    %29 = vector.broadcast %cst_11 : f32 to vector<2x1x1xf32>
    %30 = arith.divf %28, %29 : vector<2x1x1xf32>
    %cst_12 = arith.constant 9.99999974E-6 : f32
    %31 = vector.broadcast %cst_12 : f32 to vector<2x1x1xf32>
    %32 = arith.addf %30, %31 : vector<2x1x1xf32>
    %33 = math.rsqrt %32 : vector<2x1x1xf32>
    %c0_13 = arith.constant 0 : index
    %c0_14 = arith.constant 0 : index
    %c0_15 = arith.constant 0 : index
    %34 = vector.load %arg4[%c0_13, %c0_14, %c0_15] : memref<1x4x1xf32, #tpu.memory_space<vmem>>, vector<1x4x1xf32>
    %c0_16 = arith.constant 0 : index
    %c0_17 = arith.constant 0 : index
    %c0_18 = arith.constant 0 : index
    %35 = vector.load %arg2[%c0_16, %c0_17, %c0_18] : memref<2x4x1xf32, #tpu.memory_space<vmem>>, vector<2x4x1xf32>
    %c0_19 = arith.constant 0 : index
    %c0_20 = arith.constant 0 : index
    %c0_21 = arith.constant 0 : index
    %36 = vector.load %arg3[%c0_19, %c0_20, %c0_21] : memref<2x4x1xf32, #tpu.memory_space<vmem>>, vector<2x4x1xf32>
    %37 = vector.broadcast %34 : vector<1x4x1xf32> to vector<2x4x1xf32>
    %38 = arith.mulf %37, %14 : vector<2x4x1xf32>
    %cst_22 = arith.constant 1.000000e+00 : f32
    %39 = vector.broadcast %cst_22 : f32 to vector<1x4x1xf32>
    %40 = arith.subf %39, %34 : vector<1x4x1xf32>
    %41 = vector.broadcast %40 : vector<1x4x1xf32> to vector<2x4x1xf32>
    %42 = vector.broadcast %33 : vector<2x1x1xf32> to vector<2x4x1xf32>
    %43 = arith.mulf %41, %42 : vector<2x4x1xf32>
    %44 = arith.addf %38, %43 : vector<2x4x1xf32>
    %45 = vector.broadcast %34 : vector<1x4x1xf32> to vector<2x4x1xf32>
    %46 = arith.mulf %45, %4 : vector<2x4x1xf32>
    %47 = arith.mulf %46, %14 : vector<2x4x1xf32>
    %cst_23 = arith.constant 1.000000e+00 : f32
    %48 = vector.broadcast %cst_23 : f32 to vector<1x4x1xf32>
    %49 = arith.subf %48, %34 : vector<1x4x1xf32>
    %50 = vector.broadcast %49 : vector<1x4x1xf32> to vector<2x4x1xf32>
    %51 = vector.broadcast %18 : vector<2x1x1xf32> to vector<2x4x1xf32>
    %52 = arith.mulf %50, %51 : vector<2x4x1xf32>
    %53 = vector.broadcast %33 : vector<2x1x1xf32> to vector<2x4x1xf32>
    %54 = arith.mulf %52, %53 : vector<2x4x1xf32>
    %55 = arith.addf %47, %54 : vector<2x4x1xf32>
    %56 = arith.mulf %35, %44 : vector<2x4x1xf32>
    %57 = arith.mulf %35, %55 : vector<2x4x1xf32>
    %58 = arith.subf %36, %57 : vector<2x4x1xf32>
    %59 = vector.broadcast %56 : vector<2x4x1xf32> to vector<2x4x256xf32>
    %60 = arith.mulf %0, %59 : vector<2x4x256xf32>
    %61 = vector.broadcast %58 : vector<2x4x1xf32> to vector<2x4x256xf32>
    %62 = arith.addf %60, %61 : vector<2x4x256xf32>
    %c0_24 = arith.constant 0 : index
    %c0_25 = arith.constant 0 : index
    %c0_26 = arith.constant 0 : index
    %63 = vector.load %arg5[%c0_24, %c0_25, %c0_26] : memref<2x4x256xf32, #tpu.memory_space<vmem>>, vector<2x4x256xf32>
    tpu.vector_store %arg5[%c0_24, %c0_25, %c0_26], %62 {strides = array<i32>} : memref<2x4x256xf32, #tpu.memory_space<vmem>>, vector<2x4x256xf32>,
    return
  }
  func.func @transform_0(%arg0: i32) -> (i32, i32, i32) {
    %c0_i32 = arith.constant 0 : i32
    %c0_i32_0 = arith.constant 0 : i32
    %c0_i32_1 = arith.constant 0 : i32
    return %arg0, %c0_i32, %c0_i32_0 : i32, i32, i32
  }
  func.func @transform_1(%arg0: i32) -> (i32, i32, i32) {
    %c0_i32 = arith.constant 0 : i32
    %c0_i32_0 = arith.constant 0 : i32
    %c0_i32_1 = arith.constant 0 : i32
    return %arg0, %c0_i32, %c0_i32_0 : i32, i32, i32
  }
  func.func @transform_2(%arg0: i32) -> (i32, i32, i32) {
    %c0_i32 = arith.constant 0 : i32
    %c0_i32_0 = arith.constant 0 : i32
    %c0_i32_1 = arith.constant 0 : i32
    return %arg0, %c0_i32, %c0_i32_0 : i32, i32, i32
  }
  func.func @transform_3(%arg0: i32) -> (i32, i32, i32) {
    %c0_i32 = arith.constant 0 : i32
    %c0_i32_0 = arith.constant 0 : i32
    %c0_i32_1 = arith.constant 0 : i32
    %c0_i32_2 = arith.constant 0 : i32
    return %c0_i32, %c0_i32_0, %c0_i32_1 : i32, i32, i32
  }
  func.func @transform_4(%arg0: i32) -> (i32, i32, i32) {
    %c0_i32 = arith.constant 0 : i32
    %c0_i32_0 = arith.constant 0 : i32
    %c0_i32_1 = arith.constant 0 : i32
    return %arg0, %c0_i32, %c0_i32_0 : i32, i32, i32
  }
}

</mosaic_0001>

<llo_original>
// kernel: tpu_custom_call.1
$region0: #{tpu_custom_call.1}
  #allocation0 [shape = 'u32[]', space=smem, size = 0x4, offset = 0x4, fixed_abs, tag = 'smem constant byte address 0x4 - core index']
  #allocation1 [shape = 'u32[144,128]{1,0:T(1,128)}', space=vmem, size = 0x12000, scoped, tag = 'internal scratch']
  %s0 = inlined_call_operand.vmem [shape: f32[2,4,256], index: 0, kind: input, shape index: {}]
  %s1 = inlined_call_operand.vmem [shape: f32[2,4,1], index: 1, kind: input, shape index: {}]
  %s2 = inlined_call_operand.vmem [shape: f32[2,4,1], index: 2, kind: input, shape index: {}]
  %s3 = inlined_call_operand.vmem [shape: f32[1,4,1], index: 3, kind: input, shape index: {}]
  %s4 = inlined_call_operand.hbm [shape: f32[2,4,256], index: 4, kind: output, shape index: {}]
  %s5 = sld [smem:[#allocation0]]
  $region26: #{tpu_custom_call.1} parent=0
    _
  %s7 = ssub.s32 1, %s5
  %s8 = scalar_select 0, %s7, %s5
  $region1: #{tpu_custom_call.1} parent=0
    #allocation2 [shape = 'u8[8192]{0}', space=vmem, size = 0x2000, scoped, tag = 'output window, operand 0, single buffered']
    #allocation3 [shape = 's32[1]{0}', space=sflag, size = 0x4, scoped, tag = 'scoped memory for tpu_custom_call.1']
    %9 = vsyncpa [#allocation3], 0
    // Predicated region
    $region2: #{tpu_custom_call.1} parent=1 // pred_check
      _
    $region3: #{tpu_custom_call.1} parent=1 // pred_check_branch
      %11 = sbr.rel (0) target = $region5
    $region4: #{tpu_custom_call.1} parent=1 // pred_region
      _
    $region5: #{tpu_custom_call.1} parent=1 // pred_fallthru
      _
    // Predicated region
    $region6: #{tpu_custom_call.1} parent=1 // pred_check
      _
    $region7: #{tpu_custom_call.1} parent=1 // pred_check_branch
      %13 = sbr.rel (0) target = $region9
    $region8: #{tpu_custom_call.1} parent=1 // pred_region
      _
    $region9: #{tpu_custom_call.1} parent=1 // pred_fallthru
      _
    // Predicated region
    $region10: #{tpu_custom_call.1} parent=1 // pred_check
      _
    $region11: #{tpu_custom_call.1} parent=1 // pred_check_branch
      %15 = sbr.rel (0) target = $region13
    $region12: #{tpu_custom_call.1} parent=1 // pred_region
      _
    $region13: #{tpu_custom_call.1} parent=1 // pred_fallthru
      _
    // Predicated region
    $region14: #{tpu_custom_call.1} parent=1 // pred_check
      _
    $region15: #{tpu_custom_call.1} parent=1 // pred_check_branch
      %17 = sbr.rel (0) target = $region17
    $region16: #{tpu_custom_call.1} parent=1 // pred_region
      _
    $region17: #{tpu_custom_call.1} parent=1 // pred_fallthru
      _
    %v18 = vld [vmem:[%s0] sm:$0xff]
    %v19 = vld [vmem:[%s0 + $0x8] sm:$0xff]
    %v22 = vcombine.high %v18, %v18
    %v23 = vcombine.high %v19, %v19
    %vm26 = vcmask 1043456
    %v27 = vsel %vm26, %v18, 0.0
    %v28 = vsel %vm26, %v22, 0.0
    %v29 = vadd.f32 %v27, %v28
    %30 = vadd.xlane.f32.xlu0 %v29
    %v31 = vpop.xlane.xlu0 %30
    %v32 = vsel %vm26, %v19, 0.0
    %v33 = vsel %vm26, %v23, 0.0
    %v34 = vadd.f32 %v32, %v33
    %35 = vadd.xlane.f32.xlu0 %v34
    %v36 = vpop.xlane.xlu0 %35
    %v37 = vrcp.pop 256.0
    %v38 = vmul.f32 %v31, %v37
    %v39 = vmul.f32 %v36, %v37
    %v43 = vunpack.c.l.s4 839922192
    %v44 = vunpack.c.0.s8 %v43
    %v45 = vlaneseq
    %v46 = vshrl.u32 %v45, 7
    %v47 = vsub.s32 %v44, %v46
    %v48 = vrot.slane %v38, %v47
    %v50 = vunpack.c.l.s4 839922192
    %v51 = vunpack.c.0.s8 %v50
    %v52 = vlaneseq
    %v53 = vshrl.u32 %v52, 7
    %v54 = vsub.s32 %v51, %v53
    %v55 = vrot.slane %v39, %v54
    %v58 = vsub.f32 %v18, %v48
    %v59 = vsub.f32 %v19, %v55
    %v60 = vmul.f32 %v58, %v58
    %v61 = vmul.f32 %v59, %v59
    %v64 = vcombine.high %v60, %v60
    %v65 = vcombine.high %v61, %v61
    %v68 = vsel %vm26, %v60, 0.0
    %v69 = vsel %vm26, %v64, 0.0
    %v70 = vadd.f32 %v68, %v69
    %71 = vadd.xlane.f32.xlu0 %v70
    %v72 = vpop.xlane.xlu0 %71
    %v73 = vsel %vm26, %v61, 0.0
    %v74 = vsel %vm26, %v65, 0.0
    %v75 = vadd.f32 %v73, %v74
    %76 = vadd.xlane.f32.xlu0 %v75
    %v77 = vpop.xlane.xlu0 %76
    %v78 = vrcp.pop 255.0
    %v79 = vmul.f32 %v72, %v78
    %v80 = vmul.f32 %v77, %v78
    %v81 = vadd.f32 %v79, 1e-05
    %v82 = vadd.f32 %v80, 1e-05
    %v83 = vrsqrt.pop %v81
    %v84 = vrsqrt.pop %v82
    %v85 = vsel %vm26, %v38, 0.0
    %v86 = vrot.slane %v85, 4
    %v87 = vadd.f32 %v85, %v86
    %v88 = vrot.slane %v87, 2
    %v89 = vadd.f32 %v87, %v88
    %v90 = vrot.slane %v89, 1
    %v91 = vadd.f32 %v89, %v90
    %v92 = vsel %vm26, %v39, 0.0
    %v93 = vrot.slane %v92, 4
    %v94 = vadd.f32 %v92, %v93
    %v95 = vrot.slane %v94, 2
    %v96 = vadd.f32 %v94, %v95
    %v97 = vrot.slane %v96, 1
    %v98 = vadd.f32 %v96, %v97
    %v99 = vrcp.pop 4.0
    %v100 = vmul.f32 %v91, %v99
    %v101 = vmul.f32 %v98, %v99
    %v102 = vsub.f32 %v38, %v100
    %v103 = vsub.f32 %v39, %v101
    %v104 = vsel %vm26, %v72, 0.0
    %v105 = vrot.slane %v104, 4
    %v106 = vadd.f32 %v104, %v105
    %v107 = vrot.slane %v106, 2
    %v108 = vadd.f32 %v106, %v107
    %v109 = vrot.slane %v108, 1
    %v110 = vadd.f32 %v108, %v109
    %v111 = vsel %vm26, %v77, 0.0
    %v112 = vrot.slane %v111, 4
    %v113 = vadd.f32 %v111, %v112
    %v114 = vrot.slane %v113, 2
    %v115 = vadd.f32 %v113, %v114
    %v116 = vrot.slane %v115, 1
    %v117 = vadd.f32 %v115, %v116
    %v118 = vmul.f32 %v102, %v102
    %v119 = vmul.f32 %v103, %v103
    %v120 = vsel %vm26, %v118, 0.0
    %v121 = vrot.slane %v120, 4
    %v122 = vadd.f32 %v120, %v121
    %v123 = vrot.slane %v122, 2
    %v124 = vadd.f32 %v122, %v123
    %v125 = vrot.slane %v124, 1
    %v126 = vadd.f32 %v124, %v125
    %v127 = vsel %vm26, %v119, 0.0
    %v128 = vrot.slane %v127, 4
    %v129 = vadd.f32 %v127, %v128
    %v130 = vrot.slane %v129, 2
    %v131 = vadd.f32 %v129, %v130
    %v132 = vrot.slane %v131, 1
    %v133 = vadd.f32 %v131, %v132
    %v134 = vmul.f32 %v126, 256.0
    %v135 = vmul.f32 %v133, 256.0
    %v136 = vadd.f32 %v110, %v134
    %v137 = vadd.f32 %v117, %v135
    %v138 = vrcp.pop 1023.0
    %v139 = vmul.f32 %v136, %v138
    %v140 = vmul.f32 %v137, %v138
    %v141 = vadd.f32 %v139, 1e-05
    %v142 = vadd.f32 %v140, 1e-05
    %v143 = vrsqrt.pop %v141
    %v144 = vrsqrt.pop %v142
    %v145 = vld [vmem:[%s3] sm:$0xf]
    %v146 = vld [vmem:[%s1] sm:$0xf]
    %v147 = vld [vmem:[%s1 + $0x4] sm:$0xf]
    %v148 = vld [vmem:[%s2] sm:$0xf]
    %v149 = vld [vmem:[%s2 + $0x4] sm:$0xf]
    %v150 = vmul.f32 %v145, %v83
    %v151 = vmul.f32 %v145, %v84
    %v152 = vsub.f32 1.0, %v145
    %v153 = vmul.f32 %v152, %v143
    %v154 = vmul.f32 %v152, %v144
    %v155 = vadd.f32 %v150, %v153
    %v156 = vadd.f32 %v151, %v154
    %v157 = vmul.f32 %v145, %v38
    %v158 = vmul.f32 %v145, %v39
    %v159 = vmul.f32 %v157, %v83
    %v160 = vmul.f32 %v158, %v84
    %v161 = vmul.f32 %v152, %v100
    %v162 = vmul.f32 %v152, %v101
    %v163 = vmul.f32 %v161, %v143
    %v164 = vmul.f32 %v162, %v144
    %v165 = vadd.f32 %v159, %v163
    %v166 = vadd.f32 %v160, %v164
    %v167 = vmul.f32 %v146, %v155
    %v168 = vmul.f32 %v147, %v156
    %v169 = vmul.f32 %v146, %v165
    %v170 = vmul.f32 %v147, %v166
    %v171 = vsub.f32 %v148, %v169
    %v172 = vsub.f32 %v149, %v170
    %174 = vset.pattern.permute.xlu0 0
    %175 = vperm.xlu0 %174, %v167
    %v176 = vpop.permute.xlu0 %175
    %178 = vset.pattern.permute.xlu0 0
    %179 = vperm.xlu0 %178, %v168
    %v180 = vpop.permute.xlu0 %179
    %v182 = vunpack.c.l.s4 839922192
    %v183 = vunpack.c.0.s8 %v182
    %v184 = vlaneseq
    %v185 = vshrl.u32 %v184, 7
    %v186 = vsub.s32 %v183, %v185
    %v187 = vrot.slane %v176, %v186
    %v189 = vunpack.c.l.s4 839922192
    %v190 = vunpack.c.0.s8 %v189
    %v191 = vlaneseq
    %v192 = vshrl.u32 %v191, 7
    %v193 = vsub.s32 %v190, %v192
    %v194 = vrot.slane %v180, %v193
    %v197 = vmul.f32 %v18, %v187
    %v198 = vmul.f32 %v19, %v194
    %200 = vset.pattern.permute.xlu0 0
    %201 = vperm.xlu0 %200, %v171
    %v202 = vpop.permute.xlu0 %201
    %204 = vset.pattern.permute.xlu0 0
    %205 = vperm.xlu0 %204, %v172
    %v206 = vpop.permute.xlu0 %205
    %v208 = vunpack.c.l.s4 839922192
    %v209 = vunpack.c.0.s8 %v208
    %v210 = vlaneseq
    %v211 = vshrl.u32 %v210, 7
    %v212 = vsub.s32 %v209, %v211
    %v213 = vrot.slane %v202, %v212
    %v215 = vunpack.c.l.s4 839922192
    %v216 = vunpack.c.0.s8 %v215
    %v217 = vlaneseq
    %v218 = vshrl.u32 %v217, 7
    %v219 = vsub.s32 %v216, %v218
    %v220 = vrot.slane %v206, %v219
    %v223 = vadd.f32 %v197, %v213
    %v224 = vadd.f32 %v198, %v220
    %225 = vst [vmem:[#allocation2] sm:$0xff] %v223
    %226 = vst [vmem:[#allocation2 + $0x8] sm:$0xff] %v224
    // Predicated region
    $region18: #{tpu_custom_call.1} parent=1 // pred_check
      _
    $region19: #{tpu_custom_call.1} parent=1 // pred_check_branch
      %228 = sbr.rel (0) target = $region21
    $region20: #{tpu_custom_call.1} parent=1 // pred_region
      %s230 = ssub.s32 256, 256
      %231 = vsyncadd [#allocation3], %s230
      %s232 = sshll.u32 [#allocation2], 4
      %s233 = int_to_ptr.vmem [resolvable:$true] %s232
      %238 = dma.vmem_to_hbm [thread:$0]  %s233, 256, %s4, [#allocation3], 128, 128, 8
    $region21: #{tpu_custom_call.1} parent=1 // pred_fallthru
      _
    // Predicated region
    $region22: #{tpu_custom_call.1} parent=1 // pred_check
      _
    $region23: #{tpu_custom_call.1} parent=1 // pred_check_branch
      %240 = sbr.rel (0) target = $region25
    $region24: #{tpu_custom_call.1} parent=1 // pred_region
      %241 = dma.done [#allocation3], 256
    $region25: #{tpu_custom_call.1} parent=1 // pred_fallthru
      _
    %242 = vsyncpa [#allocation3], 1

</llo_original>
